<compile_context>
chip_gen: v5e
topology: v5e:2x2
jax: 0.10.0
libtpu: 0.0.40
codegen_flags: <defaults>
</compile_context>

<pallas_src>
import math

import jax
import jax.numpy as jnp
from jax.experimental import pallas as pl
from jax.experimental.pallas import tpu as pltpu

_LANE = 128
_SUBLANE = 8
# Keep the ~4x-tile double-buffered per-step footprint inside the smallest
# default scoped VMEM (v5e: 16 MiB) with headroom.
_VMEM_BUDGET_BYTES = 12 * 1024 * 1024


def _sin_kernel(freq_ref, x_ref, o_ref):
    # freq_ref: (1, W) resident block; x_ref / o_ref: (tile_rows, W).
    # Load freq once into a vreg-resident value; broadcast-multiply on the VPU,
    # sin on the EUP.  Purely elementwise.
    f = freq_ref[...]
    o_ref[...] = jnp.sin(f * x_ref[...])


def _pick_tile_rows(rows, width, itemsize):
    """Largest sublane-aligned row tile whose pipelined footprint fits VMEM."""
    bytes_per_row = width * itemsize
    # ~4 live buffers of the tile (2x input + 2x output) + a small freq row.
    max_rows = max(1, _VMEM_BUDGET_BYTES // (4 * bytes_per_row))
    if rows <= _SUBLANE:
        return rows  # full-extent block is always layout-legal
    tile = min(rows, max_rows)
    tile = max(_SUBLANE, (tile // _SUBLANE) * _SUBLANE)
    return tile


def sin_forward(x, freq, *, min_pallas_elems=16 * 1024):
    """sin(freq * x) with freq of shape (1, D) broadcast over the batch axis."""
    B, D = x.shape
    assert freq.shape == (1, D)
    freq = freq.astype(x.dtype)

    # Tiny problems: launch + DMA setup dwarfs the work; let XLA fuse it.
    # (Pass min_pallas_elems=0 to force the Pallas path.)
    if B * D < min_pallas_elems:
        return jnp.sin(freq * x)

    # Lane-dense layout: fold k batch rows per kernel row so the last dim is a
    # multiple of 128.  freq repeats with period D, so tiling it k times keeps
    # the elementwise semantics exact.
    k = 1
    if D % _LANE != 0:
        want = _LANE // math.gcd(D, _LANE)  # smallest k with (k*D) % 128 == 0
        if B % want == 0:
            k = want
    rows, width = B // k, k * D
    x2 = x.reshape(rows, width)
    freq2 = jnp.tile(freq, (1, k)) if k > 1 else freq

    tile_rows = _pick_tile_rows(rows, width, x.dtype.itemsize)
    grid = (pl.cdiv(rows, tile_rows),)

    out2 = pl.pallas_call(
        _sin_kernel,
        out_shape=jax.ShapeDtypeStruct((rows, width), x.dtype),
        grid_spec=pltpu.PrefetchScalarGridSpec(
            num_scalar_prefetch=0,
            grid=grid,
            in_specs=[
                # freq: same (1, W) block every step -> stays resident in VMEM
                pl.BlockSpec((1, width), lambda i: (0, 0)),
                # x: tile over (folded) batch rows
                pl.BlockSpec((tile_rows, width), lambda i: (i, 0)),
            ],
            out_specs=pl.BlockSpec((tile_rows, width), lambda i: (i, 0)),
        ),
        compiler_params=pltpu.CompilerParams(
            # Batch axis is independent -> megacore sharding on v7x;
            # harmless no-op on single-TC v5e/v6e.
            dimension_semantics=("parallel",),
        ),
    )(freq2, x2)

    return out2.reshape(B, D)


if __name__ == "__main__":
    key = jax.random.PRNGKey(0)

    batch, dim = 8, 32
    w = 10.0

    # Deterministic parameter init matching nn.Parameter(w * torch.ones(1, dim))
    freq = w * jnp.ones((1, dim), dtype=jnp.float32)
    x = jax.random.normal(key, (batch, dim), dtype=jnp.float32)

    # Force the Pallas path even for this tiny demo shape.
    out = sin_forward(x, freq, min_pallas_elems=0)
    out = jax.block_until_ready(out)

    # Correctness check against plain-JAX reference
    ref = jnp.sin(freq * x)
    assert out.shape == (batch, dim)
    assert jnp.allclose(out, ref, atol=1e-5, rtol=1e-5)

    print("KERNEL_OK")
</pallas_src>

<mosaic_0001>
module attributes {stable_mosaic.version = 11 : i64} {
  func.func @_sin_kernel(%arg0: i32, %arg1: memref<1x128xf32, #tpu.memory_space<vmem>>, %arg2: memref<2x128xf32, #tpu.memory_space<vmem>>, %arg3: memref<2x128xf32, #tpu.memory_space<vmem>>) attributes {dimension_semantics = [#tpu.dimension_semantics<parallel>], iteration_bounds = array<i64: 1>, scalar_prefetch = 0 : i64, scratch_operands = 0 : i64, tpu.core_type = #tpu.core_type<tc>, window_params = [{pipeline_mode = #tpu.pipeline_mode<synchronous>, transform_indices = @transform_0, window_bounds = array<i64: 1, 128>}, {transform_indices = @transform_1, window_bounds = array<i64: 2, 128>}, {transform_indices = @transform_2, window_bounds = array<i64: 2, 128>}]} {
    %c0 = arith.constant 0 : index
    %c0_0 = arith.constant 0 : index
    %0 = vector.load %arg1[%c0, %c0_0] : memref<1x128xf32, #tpu.memory_space<vmem>>, vector<1x128xf32>
    %c0_1 = arith.constant 0 : index
    %c0_2 = arith.constant 0 : index
    %1 = vector.load %arg2[%c0_1, %c0_2] : memref<2x128xf32, #tpu.memory_space<vmem>>, vector<2x128xf32>
    %2 = vector.broadcast %0 : vector<1x128xf32> to vector<2x128xf32>
    %3 = arith.mulf %2, %1 : vector<2x128xf32>
    %4 = math.sin %3 : vector<2x128xf32>
    %c0_3 = arith.constant 0 : index
    %c0_4 = arith.constant 0 : index
    %5 = vector.load %arg3[%c0_3, %c0_4] : memref<2x128xf32, #tpu.memory_space<vmem>>, vector<2x128xf32>
    tpu.vector_store %arg3[%c0_3, %c0_4], %4 {strides = array<i32>} : memref<2x128xf32, #tpu.memory_space<vmem>>, vector<2x128xf32>,
    return
  }
  func.func @transform_0(%arg0: i32) -> (i32, i32) {
    %c0_i32 = arith.constant 0 : i32
    %c0_i32_0 = arith.constant 0 : i32
    %c0_i32_1 = arith.constant 0 : i32
    return %c0_i32, %c0_i32_0 : i32, i32
  }
  func.func @transform_1(%arg0: i32) -> (i32, i32) {
    %c0_i32 = arith.constant 0 : i32
    %c0_i32_0 = arith.constant 0 : i32
    return %arg0, %c0_i32 : i32, i32
  }
  func.func @transform_2(%arg0: i32) -> (i32, i32) {
    %c0_i32 = arith.constant 0 : i32
    %c0_i32_0 = arith.constant 0 : i32
    return %arg0, %c0_i32 : i32, i32
  }
}

</mosaic_0001>

<llo_original>
// kernel: tpu_custom_call.1
$region0: #{tpu_custom_call.1}
  #allocation0 [shape = 'u32[]', space=smem, size = 0x4, offset = 0x4, fixed_abs, tag = 'smem constant byte address 0x4 - core index']
  #allocation1 [shape = 'u32[72,128]{1,0:T(1,128)}', space=vmem, size = 0x9000, scoped, tag = 'internal scratch']
  %s0 = inlined_call_operand.hbm [shape: f32[1,128], index: 0, kind: input, shape index: {}]
  %s1 = inlined_call_operand.hbm [shape: f32[2,128], index: 1, kind: input, shape index: {}]
  %s2 = inlined_call_operand.hbm [shape: f32[2,128], index: 2, kind: output, shape index: {}]
  %s3 = sld [smem:[#allocation0]]
  $region26: #{tpu_custom_call.1} parent=0
    _
  %s5 = ssub.s32 1, %s3
  %s6 = scalar_select 0, %s5, %s3
  $region1: #{tpu_custom_call.1} parent=0
    #allocation2 [shape = 'u8[512]{0}', space=vmem, size = 0x400, scoped, tag = 'input window, operand 0, single buffered']
    #allocation3 [shape = 's32[1]{0}', space=sflag, size = 0x4, scoped, tag = 'scoped memory for tpu_custom_call.1']
    #allocation4 [shape = 's32[1]{0}', space=sflag, size = 0x4, scoped, tag = 'scoped memory for tpu_custom_call.1']
    #allocation5 [shape = 'u8[1024]{0}', space=vmem, size = 0x400, scoped, tag = 'input window, operand 1, single buffered']
    #allocation6 [shape = 's32[1]{0}', space=sflag, size = 0x4, scoped, tag = 'scoped memory for tpu_custom_call.1']
    #allocation7 [shape = 'u8[1024]{0}', space=vmem, size = 0x400, scoped, tag = 'output window, operand 0, single buffered']
    %7 = vsyncpa [#allocation3], 0
    %8 = vsyncpa [#allocation6], 0
    %9 = vsyncpa [#allocation4], 0
    // Predicated region
    $region2: #{tpu_custom_call.1} parent=1 // pred_check
      _
    $region3: #{tpu_custom_call.1} parent=1 // pred_check_branch
      %11 = sbr.rel (0) target = $region5
    $region4: #{tpu_custom_call.1} parent=1 // pred_region
      %13 = vsyncadd [#allocation3], 0
      %s15 = sshll.u32 %s0, 4
      %s16 = int_to_ptr.hbm [resolvable:$true] %s15
      %s17 = sshll.u32 [#allocation2], 4
      %s18 = int_to_ptr.vmem [resolvable:$true] %s17
      %20 = dma.hbm_to_vmem [thread:$0]  %s16, 16, %s18, [#allocation3]
    $region5: #{tpu_custom_call.1} parent=1 // pred_fallthru
      _
    // Predicated region
    $region6: #{tpu_custom_call.1} parent=1 // pred_check
      _
    $region7: #{tpu_custom_call.1} parent=1 // pred_check_branch
      %22 = sbr.rel (0) target = $region9
    $region8: #{tpu_custom_call.1} parent=1 // pred_region
      %24 = vsyncadd [#allocation6], 0
      %s26 = sshll.u32 %s1, 4
      %s27 = int_to_ptr.hbm [resolvable:$true] %s26
      %s28 = sshll.u32 [#allocation5], 4
      %s29 = int_to_ptr.vmem [resolvable:$true] %s28
      %31 = dma.hbm_to_vmem [thread:$0]  %s27, 32, %s29, [#allocation6]
    $region9: #{tpu_custom_call.1} parent=1 // pred_fallthru
      _
    // Predicated region
    $region10: #{tpu_custom_call.1} parent=1 // pred_check
      _
    $region11: #{tpu_custom_call.1} parent=1 // pred_check_branch
      %33 = sbr.rel (0) target = $region13
    $region12: #{tpu_custom_call.1} parent=1 // pred_region
      %35 = dma.done [#allocation3], 16
    $region13: #{tpu_custom_call.1} parent=1 // pred_fallthru
      _
    // Predicated region
    $region14: #{tpu_custom_call.1} parent=1 // pred_check
      _
    $region15: #{tpu_custom_call.1} parent=1 // pred_check_branch
      %37 = sbr.rel (0) target = $region17
    $region16: #{tpu_custom_call.1} parent=1 // pred_region
      %39 = dma.done [#allocation6], 32
    $region17: #{tpu_custom_call.1} parent=1 // pred_fallthru
      _
    %v40 = vld [vmem:[#allocation2] sm:$0x1]
    %v41 = vld [vmem:[#allocation5] sm:$0x3]
    %v43 = vperm.slane %v40, 0
    %v45 = vmul.f32 %v43, %v41
    %v46 = vand.u32 2147483647, %v45
    %vm47 = vcmp.le.f32.partialorder %v46, 0.7853982
    %vm48 = vcmp.lt.s32.totalorder %v45, 0
    %v49 = vand.u32 %v45, 2139095040
    %v50 = vshrl.u32 %v49, 23
    %v51 = vsub.s32 %v50, 127
    %v52 = vand.u32 2147483647, %v45
    %v53 = vand.u32 %v52, 8388607
    %v54 = vor.u32 %v53, 8388608
    %v55 = vsub.s32 0, %v54
    %v56 = vadd.s32 %v51, 1
    %vm57 = vcmp.gt.s32.totalorder %v56, 0
    %v58 = vsel %vm57, %v56, 0
    %v59 = vshrl.u32 %v58, 5
    %v60 = vand.u32 %v58, 31
    %v61 = vsub.s32 32, %v60
    %v62 = vshrl.u32 683565275, %v61
    %v63 = vshll.u32 683565275, %v60
    %v64 = vshrl.u32 2475754826, %v61
    %v65 = vor.u32 %v63, %v64
    %v66 = vshll.u32 2475754826, %v60
    %v67 = vshrl.u32 2131351028, %v61
    %v68 = vor.u32 %v66, %v67
    %v69 = vshll.u32 2131351028, %v60
    %v70 = vshrl.u32 2102212464, %v61
    %v71 = vor.u32 %v69, %v70
    %v72 = vshll.u32 2102212464, %v60
    %v73 = vshrl.u32 920167782, %v61
    %v74 = vor.u32 %v72, %v73
    %v75 = vshll.u32 920167782, %v60
    %v76 = vshrl.u32 1326507024, %v61
    %v77 = vor.u32 %v75, %v76
    %vm78 = vcmp.lt.s32.totalorder %v59, 1
    %vm79 = vcmp.lt.s32.totalorder %v59, 2
    %vm80 = vcmp.lt.s32.totalorder %v59, 3
    %vm81 = vcmp.lt.s32.totalorder %v59, 4
    %v82 = vsel %vm78, %v62, %v65
    %v83 = vsel %vm81, %v71, 2102212464
    %v84 = vsel %vm80, %v68, %v83
    %v85 = vsel %vm79, %v82, %v84
    %v86 = vsel %vm78, %v65, %v68
    %v87 = vsel %vm81, %v74, 920167782
    %v88 = vsel %vm80, %v71, %v87
    %v89 = vsel %vm79, %v86, %v88
    %v90 = vsel %vm78, %v68, %v71
    %v91 = vsel %vm81, %v77, 1326507024
    %v92 = vsel %vm80, %v74, %v91
    %v93 = vsel %vm79, %v90, %v92
    %v94 = vshll.u32 %v54, 8
    %v95 = vand.u32 %v94, 65535
    %v96 = vshrl.u32 %v94, 16
    %v97 = vand.u32 %v93, 65535
    %v98 = vshrl.u32 %v93, 16
    %v99 = vmul.u32 %v95, %v97
    %v100 = vmul.u32 %v95, %v98
    %v101 = vmul.u32 %v96, %v97
    %v102 = vmul.u32 %v96, %v98
    %v103 = vshll.u32 %v100, 16
    %v104 = vshrl.u32 %v100, 16
    %v105 = vshll.u32 %v101, 16
    %v106 = vshrl.u32 %v101, 16
    %vm107 = vc.u32 %v99, %v103
    %v108 = vsel %vm107, 1, 0
    %v109 = vadd.s32 %v99, %v103
    %v110 = vadd.s32 %v102, %v108
    %vm111 = vc.u32 %v109, %v105
    %v112 = vsel %vm111, 1, 0
    %v113 = vadd.s32 %v109, %v105
    %v114 = vadd.s32 %v110, %v112
    %v115 = vadd.s32 %v114, %v104
    %v116 = vadd.s32 %v115, %v106
    %v117 = vand.u32 %v94, 65535
    %v118 = vshrl.u32 %v94, 16
    %v119 = vand.u32 %v89, 65535
    %v120 = vshrl.u32 %v89, 16
    %v121 = vmul.u32 %v117, %v119
    %v122 = vmul.u32 %v117, %v120
    %v123 = vmul.u32 %v118, %v119
    %v124 = vmul.u32 %v118, %v120
    %v125 = vshll.u32 %v122, 16
    %v126 = vshrl.u32 %v122, 16
    %v127 = vshll.u32 %v123, 16
    %v128 = vshrl.u32 %v123, 16
    %vm129 = vc.u32 %v121, %v125
    %v130 = vsel %vm129, 1, 0
    %v131 = vadd.s32 %v121, %v125
    %v132 = vadd.s32 %v124, %v130
    %vm133 = vc.u32 %v131, %v127
    %v134 = vsel %vm133, 1, 0
    %v135 = vadd.s32 %v131, %v127
    %v136 = vadd.s32 %v132, %v134
    %v137 = vadd.s32 %v136, %v126
    %v138 = vadd.s32 %v137, %v128
    %v139 = vmul.u32 %v94, %v85
    %v140 = vadd.s32 %v116, %v135
    %vm141 = vc.u32 %v116, %v135
    %v142 = vadd.s32 %v138, 1
    %v143 = vsel %vm141, %v142, %v138
    %v144 = vadd.s32 %v139, %v143
    %v145 = vadd.s32 %v144, 536870912
    %v146 = vshrl.u32 %v145, 30
    %v147 = vshll.u32 %v146, 30
    %v148 = vsub.s32 %v144, %v147
    %vm149 = vcmp.lt.s32.totalorder %v148, 0
    %v150 = vsub.s32 0, %v148
    %v151 = vsel %vm149, %v150, %v148
    %v152 = vclz %v151
    %v153 = vsub.s32 %v152, 2
    %vm154 = vcmp.gt.s32.totalorder 0, %v153
    %v155 = vsel %vm154, 0, %v153
    %v156 = vsub.s32 32, %v155
    %v157 = vshll.u32 %v148, %v155
    %v158 = vshrl.u32 %v140, %v156
    %v159 = vor.u32 %v157, %v158
    %v160 = vsub.s32 4294967266, %v155
    %v161 = vadd.s32 %v160, 127
    %v162 = vshll.u32 %v161, 23
    %v163 = vor.u32 4788187, %v162
    %v164 = vand.u32 2147483647, %v163
    %v166 = vcvt.s32.f32 %v159
    %v167 = vmul.f32 %v166, %v164
    %v168 = vxor.u32 %v167, 2147483648
    %v169 = vsel %vm48, %v168, %v167
    %v170 = vsub.s32 4, %v146
    %v171 = vsel %vm48, %v170, %v146
    %v172 = vsel %vm47, %v45, %v169
    %v173 = vsel %vm47, 0, %v171
    %v174 = vmul.f32 %v172, %v172
    %v175 = vmul.f32 %v174, -0.001358992
    %v176 = vadd.f32 %v175, 0.041655596
    %v177 = vmul.f32 %v174, %v176
    %v178 = vadd.f32 %v177, -0.4999988
    %v179 = vmul.f32 %v174, %v178
    %v180 = vadd.f32 1.0, %v179
    %v181 = vmul.f32 %v172, %v172
    %v182 = vmul.f32 %v181, -0.00019511016
    %v183 = vadd.f32 %v182, 0.008332121
    %v184 = vmul.f32 %v181, %v183
    %v185 = vadd.f32 %v184, -0.16666654
    %v186 = vmul.f32 %v181, %v185
    %v187 = vadd.f32 %v186, 1.0
    %v188 = vmul.f32 %v187, %v172
    %vm189 = vweird.f32 %v45
    %v190 = vadd.s32 %v173, 3
    %v191 = vand.u32 %v190, 3
    %vm192 = vcmp.lt.s32.totalorder %v191, 2
    %vm193 = vcmp.eq.s32.totalorder %v191, 0
    %v194 = vxor.u32 %v188, 2147483648
    %v195 = vsel %vm193, %v180, %v194
    %vm196 = vcmp.eq.s32.totalorder %v191, 2
    %v197 = vxor.u32 %v180, 2147483648
    %v198 = vsel %vm196, %v197, %v188
    %v199 = vsel %vm192, %v195, %v198
    %v200 = vsel %vm189, nan, %v199
    %201 = vst [vmem:[#allocation7] sm:$0x3] %v200
    // Predicated region
    $region18: #{tpu_custom_call.1} parent=1 // pred_check
      _
    $region19: #{tpu_custom_call.1} parent=1 // pred_check_branch
      %203 = sbr.rel (0) target = $region21
    $region20: #{tpu_custom_call.1} parent=1 // pred_region
      %205 = vsyncadd [#allocation4], 0
      %s207 = sshll.u32 [#allocation7], 4
      %s208 = int_to_ptr.vmem [resolvable:$true] %s207
      %s209 = sshll.u32 %s2, 4
      %s210 = int_to_ptr.hbm [resolvable:$true] %s209
      %212 = dma.vmem_to_hbm [thread:$0]  %s208, 32, %s210, [#allocation4]
    $region21: #{tpu_custom_call.1} parent=1 // pred_fallthru
      _
    // Predicated region
    $region22: #{tpu_custom_call.1} parent=1 // pred_check
      _
    $region23: #{tpu_custom_call.1} parent=1 // pred_check_branch
      %214 = sbr.rel (0) target = $region25
    $region24: #{tpu_custom_call.1} parent=1 // pred_region
      %216 = dma.done [#allocation4], 32
    $region25: #{tpu_custom_call.1} parent=1 // pred_fallthru
      _
    %217 = vsyncpa [#allocation3], 1
    %218 = vsyncpa [#allocation6], 1
    %219 = vsyncpa [#allocation4], 1

</llo_original>
